<compile_context>
chip_gen: v7x
topology: tpu7x:2x2x1
jax: 0.10.0
libtpu: 0.0.40
codegen_flags: <defaults>
</compile_context>

<pallas_src>
import functools
import math

import jax
import jax.numpy as jnp
from jax.experimental import pallas as pl
from jax.experimental.pallas import tpu as pltpu


def make_positional_encoding_table(d_model: int, max_len: int = 5000) -> jnp.ndarray:
    """Deterministic buffer, identical construction to the PyTorch __init__."""
    position = jnp.arange(max_len, dtype=jnp.float32)[:, None]                      # [max_len, 1]
    div_term = jnp.exp(
        jnp.arange(0, d_model, 2, dtype=jnp.float32) * (-math.log(10000.0) / d_model)
    )                                                                                # [d_model/2]
    pe = jnp.zeros((max_len, 1, d_model), dtype=jnp.float32)
    pe = pe.at[:, 0, 0::2].set(jnp.sin(position * div_term))
    pe = pe.at[:, 0, 1::2].set(jnp.cos(position * div_term))
    return pe


def _pe_dropout_kernel(seed_ref, x_ref, pe_ref, o_ref, *,
                       drop_threshold31: int, keep_scale: float,
                       apply_dropout: bool, tile_rows: int):
    # x_ref : [ts, B, D] VMEM tile, pe_ref : [ts, 1, D] VMEM tile (batch bcast in-vreg).
    y = x_ref[...] + pe_ref[...]
    if apply_dropout:
        # PyTorch nn.Dropout semantics (train mode): zero with prob p, scale kept by 1/(1-p).
        # TODO(synk): mask will not match torch's RNG bit-for-bit (expected);
        # it is a stateless hash of (seed, global element index) so it is
        # deterministic and independent of the seq-axis tiling.
        ts, B, D = y.shape
        tile = pl.program_id(0)
        row = (jax.lax.broadcasted_iota(jnp.int32, y.shape, 0).astype(jnp.uint32)
               + jnp.uint32(tile_rows) * tile.astype(jnp.uint32))
        col_b = jax.lax.broadcasted_iota(jnp.int32, y.shape, 1).astype(jnp.uint32)
        col_d = jax.lax.broadcasted_iota(jnp.int32, y.shape, 2).astype(jnp.uint32)
        idx = (row * jnp.uint32(B) + col_b) * jnp.uint32(D) + col_d      # global flat index
        seed = seed_ref[0].astype(jnp.uint32)
        # murmur3-style integer finalizer: idx ^ seed*phi, then 3 mix rounds.
        h = idx ^ (seed * jnp.uint32(0x9E3779B9))
        h = h * jnp.uint32(0xCC9E2D51)
        h = h ^ (h >> jnp.uint32(15))
        h = h * jnp.uint32(0x85EBCA6B)
        h = h ^ (h >> jnp.uint32(13))
        h = h * jnp.uint32(0xC2B2AE35)
        h = h ^ (h >> jnp.uint32(16))
        h31 = (h & jnp.uint32(0x7FFFFFFF)).astype(jnp.int32)             # uniform in [0, 2^31)
        keep = h31 >= jnp.int32(drop_threshold31)                        # P(keep) = 1 - p
        y = jnp.where(keep, y * jnp.asarray(keep_scale, y.dtype), jnp.zeros((), y.dtype))
    o_ref[...] = y.astype(o_ref.dtype)


def positional_encoding_forward(x, pe, *, dropout_p: float = 0.1, training: bool = False,
                                seed: int = 0, target_tile_bytes: int = 2 * 1024 * 1024,
                                force_kernel: bool = False):
    """x: [seq_len, batch, d_model]; pe: [max_len, 1, d_model]."""
    S, B, D = x.shape
    pe_s = pe[:S].astype(x.dtype)                            # [S, 1, D]

    apply_dropout = bool(training) and dropout_p > 0.0
    if not apply_dropout and not force_kernel:
        # Eval / p == 0: dropout is identity. A bare broadcast-add fuses for free in
        # XLA and avoids pallas_call launch + DMA setup overhead.
        return x + pe_s

    # ---- seq-axis tiling: ~target_tile_bytes per x/out tile, pad S to a multiple. ----
    row_bytes = B * D * x.dtype.itemsize
    ts = max(1, min(S, target_tile_bytes // max(1, row_bytes)))
    n_tiles = int(pl.cdiv(S, ts))
    S_pad = n_tiles * ts
    if S_pad != S:
        x_in = jnp.pad(x, ((0, S_pad - S), (0, 0), (0, 0)))
        pe_in = jnp.pad(pe_s, ((0, S_pad - S), (0, 0), (0, 0)))
    else:
        x_in, pe_in = x, pe_s

    seed_arr = jnp.array([seed], dtype=jnp.int32)            # scalar-prefetch seed (SMEM)
    drop_threshold31 = min(int(round(dropout_p * 2.0 ** 31)), 2 ** 31 - 1)
    keep_scale = 1.0 / (1.0 - dropout_p) if (apply_dropout and dropout_p < 1.0) else 1.0

    kernel = functools.partial(_pe_dropout_kernel,
                               drop_threshold31=drop_threshold31,
                               keep_scale=keep_scale,
                               apply_dropout=apply_dropout,
                               tile_rows=ts)

    out = pl.pallas_call(
        kernel,
        out_shape=jax.ShapeDtypeStruct((S_pad, B, D), x.dtype),
        grid_spec=pltpu.PrefetchScalarGridSpec(
            num_scalar_prefetch=1,
            grid=(n_tiles,),
            in_specs=[
                pl.BlockSpec((ts, B, D), lambda i, seed: (i, 0, 0)),   # x tile
                pl.BlockSpec((ts, 1, D), lambda i, seed: (i, 0, 0)),   # pe tile (no batch bcast in HBM)
            ],
            out_specs=pl.BlockSpec((ts, B, D), lambda i, seed: (i, 0, 0)),
        ),
        # Tiles are independent (mask is a hash of the global index) -> shard across TCs on v7x.
        compiler_params=pltpu.CompilerParams(dimension_semantics=("parallel",)),
    )(seed_arr, x_in, pe_in)

    return out[:S] if S_pad != S else out


if __name__ == "__main__":
    # Small shapes consistent with the module: x is [seq_len, batch, d_model].
    # d_model = 128 keeps the output lane-dense (no masked stores).
    seq_len, batch, d_model = 8, 2, 128
    max_len = 64

    key = jax.random.PRNGKey(0)
    x = jax.random.normal(key, (seq_len, batch, d_model), dtype=jnp.float32)
    pe = make_positional_encoding_table(d_model, max_len)
    ref = x + pe[:seq_len]

    # --- eval mode: plain-JAX fast path (dropout is identity) ---
    out_eval = jax.block_until_ready(
        positional_encoding_forward(x, pe, dropout_p=0.1, training=False))
    assert out_eval.shape == (seq_len, batch, d_model)
    assert jnp.allclose(out_eval, ref, atol=1e-6), "eval-mode mismatch vs reference"

    # --- kernel path with dropout disabled: exact check against the reference ---
    out_k = jax.block_until_ready(
        positional_encoding_forward(x, pe, dropout_p=0.0, training=True, force_kernel=True))
    assert out_k.shape == (seq_len, batch, d_model)
    assert jnp.allclose(out_k, ref, atol=1e-6), "kernel add path mismatch vs reference"

    # --- kernel path with in-kernel hash-PRNG dropout (train mode) ---
    p = 0.1
    out_train = jax.block_until_ready(
        positional_encoding_forward(x, pe, dropout_p=p, training=True, seed=1234))
    assert out_train.shape == (seq_len, batch, d_model)
    assert bool(jnp.all(jnp.isfinite(out_train)))
    # Every element must be either 0 (dropped) or ref/(1-p) (kept & scaled).
    scaled = ref / (1.0 - p)
    is_zero = jnp.isclose(out_train, 0.0, atol=1e-6)
    is_kept = jnp.isclose(out_train, scaled, atol=1e-5, rtol=1e-5)
    assert bool(jnp.all(is_zero | is_kept)), "dropout output not in {0, x/(1-p)}"
    # Keep-rate sanity (loose bounds; 2048 elements, expected ~0.9).
    keep_rate = float(jnp.mean(is_kept & ~is_zero))
    assert 0.7 < keep_rate < 0.99, f"unexpected keep rate {keep_rate}"

    print("KERNEL_OK")
</pallas_src>

<mosaic_0001>
module attributes {stable_mosaic.version = 11 : i64} {
  func.func @_pe_dropout_kernel(%arg0: i32, %arg1: memref<1xi32, #tpu.memory_space<smem>>, %arg2: memref<8x2x128xf32, #tpu.memory_space<vmem>>, %arg3: memref<8x1x128xf32, #tpu.memory_space<vmem>>, %arg4: memref<8x2x128xf32, #tpu.memory_space<vmem>>) attributes {dimension_semantics = [#tpu.dimension_semantics<parallel>], iteration_bounds = array<i64: 1>, scalar_prefetch = 1 : i64, scratch_operands = 0 : i64, tpu.core_type = #tpu.core_type<tc>, window_params = [{transform_indices = @transform_0, window_bounds = array<i64: 8, 2, 128>}, {transform_indices = @transform_1, window_bounds = array<i64: 8, 1, 128>}, {transform_indices = @transform_2, window_bounds = array<i64: 8, 2, 128>}]} {
    %c0 = arith.constant 0 : index
    %c0_0 = arith.constant 0 : index
    %c0_1 = arith.constant 0 : index
    %0 = vector.load %arg2[%c0, %c0_0, %c0_1] : memref<8x2x128xf32, #tpu.memory_space<vmem>>, vector<8x2x128xf32>
    %c0_2 = arith.constant 0 : index
    %c0_3 = arith.constant 0 : index
    %c0_4 = arith.constant 0 : index
    %1 = vector.load %arg3[%c0_2, %c0_3, %c0_4] : memref<8x1x128xf32, #tpu.memory_space<vmem>>, vector<8x1x128xf32>
    %2 = vector.broadcast %1 : vector<8x1x128xf32> to vector<8x2x128xf32>
    %3 = arith.addf %0, %2 : vector<8x2x128xf32>
    %c0_5 = arith.constant 0 : index
    %c0_6 = arith.constant 0 : index
    %c0_7 = arith.constant 0 : index
    %4 = vector.load %arg4[%c0_5, %c0_6, %c0_7] : memref<8x2x128xf32, #tpu.memory_space<vmem>>, vector<8x2x128xf32>
    tpu.vector_store %arg4[%c0_5, %c0_6, %c0_7], %3 {strides = array<i32>} : memref<8x2x128xf32, #tpu.memory_space<vmem>>, vector<8x2x128xf32>,
    return
  }
  func.func @transform_0(%arg0: i32, %arg1: memref<1xi32, #tpu.memory_space<smem>>) -> (i32, i32, i32) {
    %c0_i32 = arith.constant 0 : i32
    %c0_i32_0 = arith.constant 0 : i32
    %c0_i32_1 = arith.constant 0 : i32
    return %arg0, %c0_i32, %c0_i32_0 : i32, i32, i32
  }
  func.func @transform_1(%arg0: i32, %arg1: memref<1xi32, #tpu.memory_space<smem>>) -> (i32, i32, i32) {
    %c0_i32 = arith.constant 0 : i32
    %c0_i32_0 = arith.constant 0 : i32
    %c0_i32_1 = arith.constant 0 : i32
    return %arg0, %c0_i32, %c0_i32_0 : i32, i32, i32
  }
  func.func @transform_2(%arg0: i32, %arg1: memref<1xi32, #tpu.memory_space<smem>>) -> (i32, i32, i32) {
    %c0_i32 = arith.constant 0 : i32
    %c0_i32_0 = arith.constant 0 : i32
    %c0_i32_1 = arith.constant 0 : i32
    return %arg0, %c0_i32, %c0_i32_0 : i32, i32, i32
  }
}

</mosaic_0001>

<llo_original>
// kernel: tpu_custom_call.1
$region0: #{tpu_custom_call.1}
  #allocation0 [shape = 'u32[]', space=smem, size = 0x4, offset = 0x4, fixed_abs, tag = 'smem constant byte address 0x4 - core index']
  #allocation1 [shape = 'u32[144,128]{1,0:T(1,128)}', space=vmem, size = 0x12000, scoped, tag = 'internal scratch']
  #allocation2 [shape = 's32[1]{0}', space=sflag, size = 0x4, scoped, tag = 'scoped memory for tpu_custom_call.1']
  #allocation3 [shape = 's32[1]{0:T(128)S(6)}', space=smem, size = 0x200, scoped, tag = 'prefetched SMEM operand 0']
  %s0 = inlined_call_operand.<no memory space> [shape: s32[1], index: 0, kind: input, shape index: {}]
  %s1 = inlined_call_operand.hbm [shape: f32[8,2,128], index: 1, kind: input, shape index: {}]
  %s2 = inlined_call_operand.hbm [shape: f32[8,1,128], index: 2, kind: input, shape index: {}]
  %s3 = inlined_call_operand.hbm [shape: f32[8,2,128], index: 3, kind: output, shape index: {}]
  %s4 = sld [smem:[#allocation0]]
  $region26: #{tpu_custom_call.1} parent=0
    _
  %s6 = ssub.s32 1, %s4
  %s7 = scalar_select 0, %s6, %s4
  %8 = sst [smem:[#allocation3]] %s0
  $region1: #{tpu_custom_call.1} parent=0
    #allocation4 [shape = 'u8[8192]{0}', space=vmem, size = 0x2000, scoped, tag = 'input window, operand 1, single buffered']
    #allocation5 [shape = 's32[1]{0}', space=sflag, size = 0x4, scoped, tag = 'scoped memory for tpu_custom_call.1']
    #allocation6 [shape = 's32[1]{0}', space=sflag, size = 0x4, scoped, tag = 'scoped memory for tpu_custom_call.1']
    #allocation7 [shape = 'u8[4096]{0}', space=vmem, size = 0x1000, scoped, tag = 'input window, operand 2, single buffered']
    #allocation8 [shape = 's32[1]{0}', space=sflag, size = 0x4, scoped, tag = 'scoped memory for tpu_custom_call.1']
    #allocation9 [shape = 'u8[8192]{0}', space=vmem, size = 0x2000, scoped, tag = 'output window, operand 0, single buffered']
    %9 = vsyncpa [#allocation5], 0
    %10 = vsyncpa [#allocation8], 0
    %11 = vsyncpa [#allocation6], 0
    // Predicated region
    $region2: #{tpu_custom_call.1} parent=1 // pred_check
      _
    $region3: #{tpu_custom_call.1} parent=1 // pred_check_branch
      %13 = sbr.rel (0) target = $region5
    $region4: #{tpu_custom_call.1} parent=1 // pred_region
      %s15 = ssub.s32 256, 256
      %16 = vsyncadd [#allocation5], %s15
      %s17 = sshll.u32 [#allocation4], 4
      %s18 = int_to_ptr.vmem [resolvable:$true] %s17
      %23 = dma.hbm_to_vmem [thread:$0]  %s1, 256, %s18, [#allocation5], 32, 32, 2
    $region5: #{tpu_custom_call.1} parent=1 // pred_fallthru
      _
    // Predicated region
    $region6: #{tpu_custom_call.1} parent=1 // pred_check
      _
    $region7: #{tpu_custom_call.1} parent=1 // pred_check_branch
      %25 = sbr.rel (0) target = $region9
    $region8: #{tpu_custom_call.1} parent=1 // pred_region
      %s27 = ssub.s32 128, 128
      %28 = vsyncadd [#allocation8], %s27
      %s29 = sshll.u32 [#allocation7], 4
      %s30 = int_to_ptr.vmem [resolvable:$true] %s29
      %35 = dma.hbm_to_vmem [thread:$0]  %s2, 128, %s30, [#allocation8], 16, 16, 1
    $region9: #{tpu_custom_call.1} parent=1 // pred_fallthru
      _
    // Predicated region
    $region10: #{tpu_custom_call.1} parent=1 // pred_check
      _
    $region11: #{tpu_custom_call.1} parent=1 // pred_check_branch
      %37 = sbr.rel (0) target = $region13
    $region12: #{tpu_custom_call.1} parent=1 // pred_region
      %38 = dma.done [#allocation5], 256
    $region13: #{tpu_custom_call.1} parent=1 // pred_fallthru
      _
    // Predicated region
    $region14: #{tpu_custom_call.1} parent=1 // pred_check
      _
    $region15: #{tpu_custom_call.1} parent=1 // pred_check_branch
      %40 = sbr.rel (0) target = $region17
    $region16: #{tpu_custom_call.1} parent=1 // pred_region
      %41 = dma.done [#allocation8], 128
    $region17: #{tpu_custom_call.1} parent=1 // pred_fallthru
      _
    %v42 = vld [vmem:[#allocation4] sm:$0x3]
    %v43 = vld [vmem:[#allocation4 + $0x2] sm:$0x3]
    %v44 = vld [vmem:[#allocation4 + $0x4] sm:$0x3]
    %v45 = vld [vmem:[#allocation4 + $0x6] sm:$0x3]
    %v46 = vld [vmem:[#allocation4 + $0x8] sm:$0x3]
    %v47 = vld [vmem:[#allocation4 + $0xa] sm:$0x3]
    %v48 = vld [vmem:[#allocation4 + $0xc] sm:$0x3]
    %v49 = vld [vmem:[#allocation4 + $0xe] sm:$0x3]
    %v50 = vld [vmem:[#allocation7] sm:$0x1]
    %v51 = vld [vmem:[#allocation7 + $0x1] sm:$0x1]
    %v52 = vld [vmem:[#allocation7 + $0x2] sm:$0x1]
    %v53 = vld [vmem:[#allocation7 + $0x3] sm:$0x1]
    %v54 = vld [vmem:[#allocation7 + $0x4] sm:$0x1]
    %v55 = vld [vmem:[#allocation7 + $0x5] sm:$0x1]
    %v56 = vld [vmem:[#allocation7 + $0x6] sm:$0x1]
    %v57 = vld [vmem:[#allocation7 + $0x7] sm:$0x1]
    %v66 = vlaneseq
    %v67 = vshrl.u32 %v66, 7
    %v68 = vsub.s32 0, %v67
    %v69 = vrot.slane %v50, %v68
    %v70 = vlaneseq
    %v71 = vshrl.u32 %v70, 7
    %v72 = vsub.s32 0, %v71
    %v73 = vrot.slane %v51, %v72
    %v74 = vlaneseq
    %v75 = vshrl.u32 %v74, 7
    %v76 = vsub.s32 0, %v75
    %v77 = vrot.slane %v52, %v76
    %v78 = vlaneseq
    %v79 = vshrl.u32 %v78, 7
    %v80 = vsub.s32 0, %v79
    %v81 = vrot.slane %v53, %v80
    %v82 = vlaneseq
    %v83 = vshrl.u32 %v82, 7
    %v84 = vsub.s32 0, %v83
    %v85 = vrot.slane %v54, %v84
    %v86 = vlaneseq
    %v87 = vshrl.u32 %v86, 7
    %v88 = vsub.s32 0, %v87
    %v89 = vrot.slane %v55, %v88
    %v90 = vlaneseq
    %v91 = vshrl.u32 %v90, 7
    %v92 = vsub.s32 0, %v91
    %v93 = vrot.slane %v56, %v92
    %v94 = vlaneseq
    %v95 = vshrl.u32 %v94, 7
    %v96 = vsub.s32 0, %v95
    %v97 = vrot.slane %v57, %v96
    %v106 = vadd.f32 %v42, %v69
    %v107 = vadd.f32 %v43, %v73
    %v108 = vadd.f32 %v44, %v77
    %v109 = vadd.f32 %v45, %v81
    %v110 = vadd.f32 %v46, %v85
    %v111 = vadd.f32 %v47, %v89
    %v112 = vadd.f32 %v48, %v93
    %v113 = vadd.f32 %v49, %v97
    %114 = vst [vmem:[#allocation9] sm:$0x3] %v106
    %115 = vst [vmem:[#allocation9 + $0x2] sm:$0x3] %v107
    %116 = vst [vmem:[#allocation9 + $0x4] sm:$0x3] %v108
    %117 = vst [vmem:[#allocation9 + $0x6] sm:$0x3] %v109
    %118 = vst [vmem:[#allocation9 + $0x8] sm:$0x3] %v110
    %119 = vst [vmem:[#allocation9 + $0xa] sm:$0x3] %v111
    %120 = vst [vmem:[#allocation9 + $0xc] sm:$0x3] %v112
    %121 = vst [vmem:[#allocation9 + $0xe] sm:$0x3] %v113
    // Predicated region
    $region18: #{tpu_custom_call.1} parent=1 // pred_check
      _
    $region19: #{tpu_custom_call.1} parent=1 // pred_check_branch
      %123 = sbr.rel (0) target = $region21
    $region20: #{tpu_custom_call.1} parent=1 // pred_region
      %s125 = ssub.s32 256, 256
      %126 = vsyncadd [#allocation6], %s125
      %s127 = sshll.u32 [#allocation9], 4
      %s128 = int_to_ptr.vmem [resolvable:$true] %s127
      %133 = dma.vmem_to_hbm [thread:$0]  %s128, 256, %s3, [#allocation6], 32, 32, 2
    $region21: #{tpu_custom_call.1} parent=1 // pred_fallthru
      _
    // Predicated region
    $region22: #{tpu_custom_call.1} parent=1 // pred_check
      _
    $region23: #{tpu_custom_call.1} parent=1 // pred_check_branch
      %135 = sbr.rel (0) target = $region25
    $region24: #{tpu_custom_call.1} parent=1 // pred_region
      %136 = dma.done [#allocation6], 256
    $region25: #{tpu_custom_call.1} parent=1 // pred_fallthru
      _
    %137 = vsyncpa [#allocation5], 1
    %138 = vsyncpa [#allocation8], 1
    %139 = vsyncpa [#allocation6], 1

</llo_original>
